<compile_context>
chip_gen: v5e
topology: v5e:2x2
jax: 0.10.0
libtpu: 0.0.40
codegen_flags: <defaults>
</compile_context>

<pallas_src>
import jax
import jax.numpy as jnp
from jax.experimental import pallas as pl
from jax.experimental.pallas import tpu as pltpu


def simplenet_kernel(x_ref, w_ref, b_ref, o_ref):
    # x_ref: (tile_b, D) VMEM, any float dtype (upcast here, not in wrapper)
    # w_ref: (D, 1)      VMEM, f32 weight column (nn.Linear weight, reshaped)
    # b_ref: (1,)        SMEM, f32 scalar bias
    # o_ref: (tile_b, 1) VMEM, f32 logits
    x = x_ref[...].astype(jnp.float32)
    # MXU dot: N=1 wastes systolic columns, but those are free in a mem-bound
    # kernel and it keeps the per-row reduce off the XLU (v7x concern).
    logits = jnp.dot(x, w_ref[...], preferred_element_type=jnp.float32)
    o_ref[...] = (logits + b_ref[0]).astype(o_ref.dtype)
    # TODO(synk): if a downstream sigmoid is ever fused into forward(), apply
    # jax.nn.sigmoid here (EUP slot, essentially free) instead of a separate op.


def _round_up(v: int, m: int) -> int:
    return ((v + m - 1) // m) * m


def _vmem_capacity_bytes() -> int:
    try:
        return int(pltpu.get_tpu_info().vmem_capacity_bytes)
    except Exception:
        return 64 * 1024 * 1024  # conservative: v7x per-TC physical VMEM


def simplenet_forward(x, weight, bias, *, max_batch_tile=None):
    """
    x:      (B, D) float32 or bfloat16 activations (upcast in-kernel)
    weight: (1, D) float32   (PyTorch nn.Linear weight layout)
    bias:   (1,)   float32
    returns (B,)   float32   raw logit per example (matches .squeeze(1))
    """
    B, D = x.shape
    # (1, D) -> (D, 1) is a free contiguous reshape (D*4 bytes; negligible).
    w_col = weight.reshape(D, 1).astype(jnp.float32)
    b = bias.reshape(1).astype(jnp.float32)

    d_pad = _round_up(D, 128)               # lane-padded row width in VMEM
    x_item = x.dtype.itemsize
    x_resident_bytes = _round_up(B, 8) * d_pad * x_item

    if max_batch_tile is None and x_resident_bytes <= (1 << 20):
        # --- Tiny input: gridless single tile (no grid-step machinery). ---
        out = pl.pallas_call(
            simplenet_kernel,
            out_shape=jax.ShapeDtypeStruct((B, 1), jnp.float32),
            in_specs=[
                pl.BlockSpec(memory_space=pltpu.MemorySpace.VMEM),   # x
                pl.BlockSpec(memory_space=pltpu.MemorySpace.VMEM),   # w column
                pl.BlockSpec(memory_space=pltpu.MemorySpace.SMEM),   # bias
            ],
            out_specs=pl.BlockSpec(memory_space=pltpu.MemorySpace.VMEM),
        )(x, w_col, b)
        return out[:, 0]

    # --- Batch-tiled path: grid over batch, "parallel" so v7x uses both TCs. ---
    phys_vmem = _vmem_capacity_bytes()
    # Double-buffered weight column, lane-padded: 2 * ceil8(D) * 128 * 4 bytes.
    w_buf_bytes = 2 * _round_up(D, 8) * 128 * 4
    # Buffer budget for the x + out pipelined buffers (generation-aware).
    budget = min(phys_vmem // 2, 32 << 20) - w_buf_bytes - (1 << 20)
    budget = max(budget, 1 << 20)

    # Per-row VMEM cost: double-buffered x row (lane-padded) + double-buffered
    # (tile_b, 1) f32 output row (lane-padded to 128).
    per_row = 2 * (d_pad * x_item + 128 * 4)
    tile_b = max(8, (budget // per_row) // 8 * 8)
    # Use both TensorCores on v7x: never fewer than 2 tiles on this path.
    tile_b = min(tile_b, _round_up(-(-B // 2), 8))
    if max_batch_tile is not None:
        tile_b = min(tile_b, max(8, _round_up(max_batch_tile, 8)))
    tile_b = min(tile_b, _round_up(B, 8))
    # TODO(synk): for very wide D (8 rows * d_pad already over budget) add a
    # second "arbitrary" grid axis over D with a small f32 accumulator and
    # pl.when init/finalize instead of relying on a single D-wide block.
    # TODO(synk): for D < 128, packing 128//D rows per lane-row (free wrapper
    # reshape) would cut the 128-lane padding waste and grow usable tiles.

    num_tiles = pl.cdiv(B, tile_b)           # ragged last block: OOB writes dropped

    footprint = tile_b * per_row + w_buf_bytes
    vmem_limit = min(int(footprint * 1.25) + (2 << 20), phys_vmem - (8 << 20))
    vmem_limit = max(vmem_limit, 16 << 20)

    out = pl.pallas_call(
        simplenet_kernel,
        out_shape=jax.ShapeDtypeStruct((B, 1), jnp.float32),
        grid=(num_tiles,),
        in_specs=[
            pl.BlockSpec((tile_b, D), lambda i: (i, 0)),              # x tile
            pl.BlockSpec((D, 1), lambda i: (0, 0)),                   # w column
            pl.BlockSpec(memory_space=pltpu.MemorySpace.SMEM),        # bias
        ],
        out_specs=pl.BlockSpec((tile_b, 1), lambda i: (i, 0)),
        compiler_params=pltpu.CompilerParams(
            dimension_semantics=("parallel",),
            vmem_limit_bytes=int(vmem_limit),
        ),
    )(x, w_col, b)
    # TODO(synk): a lane-dense (num_tiles, tile_b) output slab would remove the
    # masked single-lane stores; kept (B, 1) since output bytes are tiny here.
    return out[:, 0]


if __name__ == "__main__":
    key = jax.random.PRNGKey(0)
    k_x, k_w, k_b, k_x2, k_w2, k_b2 = jax.random.split(key, 6)

    # --- Primary check: shapes implied by SimpleNet(input_size=32), batch=8. ---
    batch, input_size = 8, 32
    x = jax.random.normal(k_x, (batch, input_size), dtype=jnp.float32)
    weight = jax.random.normal(k_w, (1, input_size), dtype=jnp.float32) * 0.1
    bias = jax.random.normal(k_b, (1,), dtype=jnp.float32) * 0.1

    y = jax.block_until_ready(simplenet_forward(x, weight, bias))
    # Reference without any matmul (exact f32 elementwise + sum).
    y_ref = jnp.sum(x * weight, axis=-1) + bias[0]
    assert y.shape == (batch,)
    # Tolerance covers MXU multi-pass f32 accumulation-order differences.
    assert jnp.allclose(y, y_ref, atol=1e-3, rtol=1e-3)

    # --- Secondary check: exercise the tiled path with a ragged last block
    #     (200 rows, forced 64-row tiles -> 4 tiles, last tile ragged). ---
    batch2, input_size2 = 200, 96
    x2 = jax.random.normal(k_x2, (batch2, input_size2), dtype=jnp.float32)
    weight2 = jax.random.normal(k_w2, (1, input_size2), dtype=jnp.float32) * 0.1
    bias2 = jax.random.normal(k_b2, (1,), dtype=jnp.float32) * 0.1

    y2 = jax.block_until_ready(
        simplenet_forward(x2, weight2, bias2, max_batch_tile=64))
    y2_ref = jnp.sum(x2 * weight2, axis=-1) + bias2[0]
    assert y2.shape == (batch2,)
    assert jnp.allclose(y2, y2_ref, atol=1e-3, rtol=1e-3)

    print("KERNEL_OK")
</pallas_src>

<mosaic_0001>
module attributes {stable_mosaic.version = 11 : i64} {
  func.func @simplenet_kernel(%arg0: memref<8x32xf32, #tpu.memory_space<vmem>>, %arg1: memref<32x1xf32, #tpu.memory_space<vmem>>, %arg2: memref<1xf32, #tpu.memory_space<smem>>, %arg3: memref<8x1xf32, #tpu.memory_space<vmem>>) attributes {dimension_semantics = [], scalar_prefetch = 0 : i64, scratch_operands = 0 : i64, tpu.core_type = #tpu.core_type<tc>} {
    %c0 = arith.constant 0 : index
    %c0_0 = arith.constant 0 : index
    %0 = vector.load %arg0[%c0, %c0_0] : memref<8x32xf32, #tpu.memory_space<vmem>>, vector<8x32xf32>
    %c0_1 = arith.constant 0 : index
    %c0_2 = arith.constant 0 : index
    %1 = vector.load %arg1[%c0_1, %c0_2] : memref<32x1xf32, #tpu.memory_space<vmem>>, vector<32x1xf32>
    %cst = arith.constant dense<0.000000e+00> : vector<8x1xf32>
    %2 = tpu.matmul %0, %1, %cst {dimension_numbers = #tpu.dot_dimension_numbers<[1], [0], [0], [1], [0, 0, 1, 1], [], []>} : vector<8x32xf32>, vector<32x1xf32>, vector<8x1xf32> -> vector<8x1xf32>
    %c0_3 = arith.constant 0 : index
    %3 = memref.load %arg2[%c0_3] : memref<1xf32, #tpu.memory_space<smem>>
    %4 = vector.broadcast %3 : f32 to vector<8x1xf32>
    %5 = arith.addf %2, %4 : vector<8x1xf32>
    %c0_4 = arith.constant 0 : index
    %c0_5 = arith.constant 0 : index
    %6 = vector.load %arg3[%c0_4, %c0_5] : memref<8x1xf32, #tpu.memory_space<vmem>>, vector<8x1xf32>
    tpu.vector_store %arg3[%c0_4, %c0_5], %5 {strides = array<i32>} : memref<8x1xf32, #tpu.memory_space<vmem>>, vector<8x1xf32>,
    return
  }
}

</mosaic_0001>

<llo_original>
// kernel: tpu_custom_call.1
$region0: #{tpu_custom_call.1}
  #allocation0 [shape = 'u32[]', space=smem, size = 0x4, offset = 0x4, fixed_abs, tag = 'smem constant byte address 0x4 - core index']
  #allocation1 [shape = 'u32[72,128]{1,0:T(1,128)}', space=vmem, size = 0x9000, scoped, tag = 'internal scratch']
  #allocation2 [shape = 'f32[1]{0:T(128)S(6)}', space=smem, size = 0x200, scoped, tag = 'scoped memory for tpu_custom_call.1']
  %s0 = inlined_call_operand.vmem [shape: f32[8,32], index: 0, kind: input, shape index: {}]
  %s1 = inlined_call_operand.vmem [shape: f32[32,1], index: 1, kind: input, shape index: {}]
  %s2 = inlined_call_operand.<no memory space> [shape: f32[1], index: 2, kind: input, shape index: {}]
  %s3 = inlined_call_operand.vmem [shape: f32[8,1], index: 3, kind: output, shape index: {}]
  %s4 = sld [smem:[#allocation0]]
  $region22: #{tpu_custom_call.1} parent=0
    _
  %s6 = ssub.s32 1, %s4
  %s7 = scalar_select 0, %s6, %s4
  %8 = sst [smem:[#allocation2]] %s2
  // Predicated region
  $region2: #{tpu_custom_call.1} parent=0 // pred_check
    _
  $region3: #{tpu_custom_call.1} parent=0 // pred_check_branch
    %10 = sbr.rel (0) target = $region5
  $region4: #{tpu_custom_call.1} parent=0 // pred_region
    _
  $region5: #{tpu_custom_call.1} parent=0 // pred_fallthru
    _
  // Predicated region
  $region6: #{tpu_custom_call.1} parent=0 // pred_check
    _
  $region7: #{tpu_custom_call.1} parent=0 // pred_check_branch
    %12 = sbr.rel (0) target = $region9
  $region8: #{tpu_custom_call.1} parent=0 // pred_region
    _
  $region9: #{tpu_custom_call.1} parent=0 // pred_fallthru
    _
  // Predicated region
  $region10: #{tpu_custom_call.1} parent=0 // pred_check
    _
  $region11: #{tpu_custom_call.1} parent=0 // pred_check_branch
    %14 = sbr.rel (0) target = $region13
  $region12: #{tpu_custom_call.1} parent=0 // pred_region
    _
  $region13: #{tpu_custom_call.1} parent=0 // pred_fallthru
    _
  %v15 = vld [vmem:[%s0] sm:$0xff]
  %v16 = vld [vmem:[%s1] sm:$0xff]
  %v17 = vld [vmem:[%s1 + $0x8] sm:$0xff]
  %v18 = vld [vmem:[%s1 + $0x10] sm:$0xff]
  %v19 = vld [vmem:[%s1 + $0x18] sm:$0xff]
  %s20 = sld [smem:[#allocation2]]
  %v21 = vstv %s20
  %vm22 = vcmask 261120
  %v24 = vsel %vm22, %v15, 0
  %26 = vmatpush.msra.mxu0 0.0
  %27 = vmatpush.msra.mxu0 0.0
  %28 = vmatpush.msra.mxu0 0.0
  %29 = vmatpush.msra.mxu0 0.0
  %30 = vmatpush.msra.mxu0 0.0
  %31 = vmatpush.msra.mxu0 0.0
  %32 = vmatpush.msra.mxu0 0.0
  %33 = vmatpush.msra.mxu0 0.0
  %34 = vmatpush.msra.mxu0 0.0
  %35 = vmatpush.msra.mxu0 0.0
  %36 = vmatpush.msra.mxu0 0.0
  %37 = vmatpush.msra.mxu0 0.0
  %38 = vmatpush.msra.mxu0 %v19
  %39 = vmatpush.msra.mxu0 %v18
  %40 = vmatpush.msra.mxu0 %v17
  %41 = vmatpush.msra.mxu0 %v16
  %42 = vmatmul.f32.gmra.mxu0 %v24
  %v43 = vpop.f32.mrf.mxu0
  %v44 = vadd.f32 %v21, %v43
  %45 = vdwg.mxu0
  %vm46 = vcmask 7168
  %47 = vst.msk [vmem:[%s3] sm:$0xff] %vm46, %v44
  // Predicated region
  $region14: #{tpu_custom_call.1} parent=0 // pred_check
    _
  $region15: #{tpu_custom_call.1} parent=0 // pred_check_branch
    %49 = sbr.rel (0) target = $region17
  $region16: #{tpu_custom_call.1} parent=0 // pred_region
    _
  $region17: #{tpu_custom_call.1} parent=0 // pred_fallthru
    _
  // Predicated region
  $region18: #{tpu_custom_call.1} parent=0 // pred_check
    _
  $region19: #{tpu_custom_call.1} parent=0 // pred_check_branch
    %51 = sbr.rel (0) target = $region21
  $region20: #{tpu_custom_call.1} parent=0 // pred_region
    _
  $region21: #{tpu_custom_call.1} parent=0 // pred_fallthru
    _

</llo_original>
